<compile_context>
chip_gen: v7x
topology: tpu7x:2x2x1
jax: 0.10.0
libtpu: 0.0.40
codegen_flags: <defaults>
</compile_context>

<pallas_src>
import numpy as np
import jax
import jax.numpy as jnp
from jax.experimental import pallas as pl
from jax.experimental.pallas import tpu as pltpu


def rand_bbox(size, lam, rng):
    # Mirrors the PyTorch helper (np.int -> int for modern numpy).
    W = size[2]
    H = size[3]
    cut_rat = np.sqrt(1.0 - lam)
    cut_w = int(W * cut_rat)
    cut_h = int(H * cut_rat)
    cx = int(rng.integers(W))
    cy = int(rng.integers(H))
    bbx1 = int(np.clip(cx - cut_w // 2, 0, W))
    bby1 = int(np.clip(cy - cut_h // 2, 0, H))
    bbx2 = int(np.clip(cx + cut_w // 2, 0, W))
    bby2 = int(np.clip(cy + cut_h // 2, 0, H))
    return bbx1, bby1, bbx2, bby2


def _cutmix_kernel(idx_ref, x_ref, xmix_ref, mask_ref, o_ref):
    """CutMix blend of one (1, C, S_sub, 128) tile.

    idx_ref  : SMEM int32[B] mix permutation (scalar prefetch; consumed by
               xmix's index_map, unused in the body).
    x_ref    : VMEM (1, C, S_sub, 128) tile of the original image.
    xmix_ref : VMEM (1, C, S_sub, 128) tile of the permuted image x[mix_index[b]]
               (bbox-band block for out-of-band steps; never selected there).
    mask_ref : VMEM (1, 1, S_sub, 128) int8 bbox mask (1 inside the cut box).
    o_ref    : VMEM (1, C, S_sub, 128) output tile.
    """
    del idx_ref
    inside = mask_ref[...] != 0               # (1,1,S,128) -> broadcasts over C
    o_ref[...] = jnp.where(inside, xmix_ref[...], x_ref[...])


def _choose_spatial_blocking(HW, C, itemsize, max_block_bytes):
    """Rows-per-block / num-blocks over the retiled (HW/128, 128) spatial grid.

    Blocks are dense (C is a leading dim), so the byte budget is exact.
    Granularity follows the dtype's native sublane packing so blocks never
    straddle a packed tile (8 for f32, 16 for bf16, 32 for int8).
    """
    R_raw = -(-HW // 128)                                   # ceil(HW / 128)
    gran = max(8, 8 * (4 // max(1, itemsize)))
    rows_budget = max(gran, max_block_bytes // (C * 128 * itemsize))
    if R_raw <= rows_budget:
        return R_raw, 1                                     # single spatial tile
    rows_budget = (rows_budget // gran) * gran
    for t in range(rows_budget, gran - 1, -gran):           # largest clean divisor
        if R_raw % t == 0:
            return t, R_raw // t
    return rows_budget, -(-R_raw // rows_budget)            # pad R up to a multiple


def cutmix_forward(x, mix_index, bbox, *, max_block_bytes=4 * 1024 * 1024,
                   vmem_limit_bytes=48 * 1024 * 1024):
    """CutMix forward.

    x         : (B, C, H, W) array.
    mix_index : (B,) int permutation.
    bbox      : host-side (bbx1, bby1, bbx2, bby2) ints from rand_bbox.
    """
    B, C, H, W = x.shape
    HW = H * W
    itemsize = jnp.dtype(x.dtype).itemsize

    bbx1, bby1, bbx2, bby2 = (int(v) for v in np.asarray(bbox, dtype=np.int64))
    # Host-side early-out: empty bbox (lam close to 1) makes the mix a no-op.
    if bbx1 == bbx2 or bby1 == bby2:
        return x

    S_sub, n_s = _choose_spatial_blocking(HW, C, itemsize, max_block_bytes)
    R_pad = S_sub * n_s
    HW_pad = R_pad * 128

    # int8 bbox mask over the padded, retiled spatial grid.  Shaped so that the
    # block always equals the full trailing dims (legal for any packed dtype);
    # the padded tail (flat >= HW) stays 0 so padded lanes just copy x.
    m2d = np.zeros((H, W), dtype=np.int8)
    m2d[bbx1:bbx2, bby1:bby2] = 1                 # bbx indexes dim 2, bby dim 3
    mask_flat = np.zeros((HW_pad,), dtype=np.int8)
    mask_flat[:HW] = m2d.reshape(-1)
    mask = jnp.asarray(mask_flat.reshape(1, n_s, S_sub, 128))

    mix_index = jnp.asarray(mix_index, dtype=jnp.int32)

    x_flat = x.reshape(B, C, HW)
    if HW_pad != HW:                              # only for non-128-divisible HW
        x_flat = jnp.pad(x_flat, ((0, 0), (0, 0), (0, HW_pad - HW)))
    x4 = x_flat.reshape(B, C, R_pad, 128)         # lane-dense, sublane-dense

    # Spatial-block band [s_lo, s_hi] that can contain any bbox pixel.  Blocks
    # outside it clamp to the band edge -> repeated block index -> Pallas
    # dedupes the xmix DMA (their data is never selected: mask == 0 there).
    block_elems = S_sub * 128
    s_lo = (bbx1 * W + bby1) // block_elems
    s_hi = ((bbx2 - 1) * W + (bby2 - 1)) // block_elems

    def x_map(b, s, idx_r):
        return (b, 0, s, 0)

    def xmix_map(b, s, idx_r):
        s_c = jnp.minimum(jnp.maximum(s, s_lo), s_hi)
        return (idx_r[b], 0, s_c, 0)

    def mask_map(b, s, idx_r):
        return (0, s, 0, 0)

    grid_spec = pltpu.PrefetchScalarGridSpec(
        num_scalar_prefetch=1,
        grid=(B, n_s),                            # s innermost -> dedup works
        in_specs=[
            pl.BlockSpec((1, C, S_sub, 128), x_map),
            pl.BlockSpec((1, C, S_sub, 128), xmix_map),
            pl.BlockSpec((1, 1, S_sub, 128), mask_map),
        ],
        out_specs=pl.BlockSpec((1, C, S_sub, 128), x_map),
    )

    out4 = pl.pallas_call(
        _cutmix_kernel,
        out_shape=jax.ShapeDtypeStruct((B, C, R_pad, 128), x.dtype),
        grid_spec=grid_spec,
        compiler_params=pltpu.CompilerParams(
            # Every (b, s) block is independent -> shard across both
            # TensorCores on v7x; no-op on single-TC v5e/v6e.
            dimension_semantics=("parallel", "parallel"),
            # Dense ~4 MiB blocks, double buffered over 3 image streams plus
            # the tiny int8 mask -> ~25 MiB worst case; 48 MiB fits every
            # generation (v7x: 64 MiB physical, v5e default scoped is only 16).
            vmem_limit_bytes=vmem_limit_bytes,
        ),
    )(mix_index, x4, x4, mask)

    out_flat = out4.reshape(B, C, HW_pad)
    if HW_pad != HW:
        out_flat = out_flat[:, :, :HW]
    return out_flat.reshape(B, C, H, W)


if __name__ == "__main__":
    # --- Test 1: small image, module-style random sampling -----------------
    B, C, H, W = 2, 4, 16, 16
    x = jax.random.normal(jax.random.PRNGKey(0), (B, C, H, W), dtype=jnp.float32)

    # Deterministic "sampling" step (MixUp.sample + CutMix.mix_image glue):
    rng = np.random.default_rng(0)
    alpha = 1.0
    lam = float(rng.beta(alpha, alpha))
    lam = max(lam, 1.0 - lam)                      # even=False path
    mix_index = np.asarray(rng.permutation(B), dtype=np.int32)
    bbx1, bby1, bbx2, bby2 = rand_bbox((B, C, H, W), lam, rng)
    bbox = np.array([bbx1, bby1, bbx2, bby2], dtype=np.int32)

    out = jax.block_until_ready(cutmix_forward(x, mix_index, bbox))

    # Updated mix_value, as set by mix_image (host-side scalar glue).
    lam_new = 1.0 - (bbx2 - bbx1) * (bby2 - bby1) / (W * H)
    assert 0.0 <= lam_new <= 1.0

    x_np = np.asarray(x)
    ref = x_np.copy()
    ref[:, :, bbx1:bbx2, bby1:bby2] = x_np[mix_index][:, :, bbx1:bbx2, bby1:bby2]
    assert np.allclose(np.asarray(out), ref), "mismatch vs reference (small)"

    # --- Test 2: spatially tiled path + bbox-clamped xmix gather dedup -----
    B2, C2, H2, W2 = 2, 3, 64, 96
    x2 = jax.random.normal(jax.random.PRNGKey(1), (B2, C2, H2, W2), jnp.float32)
    mix_index2 = np.array([1, 0], dtype=np.int32)
    bbox2 = np.array([10, 20, 40, 80], dtype=np.int32)   # (bbx1, bby1, bbx2, bby2)
    out2 = jax.block_until_ready(
        cutmix_forward(x2, mix_index2, bbox2, max_block_bytes=16 * 1024))
    a1, b1, a2, b2 = (int(v) for v in bbox2)
    x2_np = np.asarray(x2)
    ref2 = x2_np.copy()
    ref2[:, :, a1:a2, b1:b2] = x2_np[mix_index2][:, :, a1:a2, b1:b2]
    assert np.allclose(np.asarray(out2), ref2), "mismatch vs reference (tiled)"

    # --- Test 3: non-128-divisible H*W (padded lane layout) ----------------
    B3, C3, H3, W3 = 2, 3, 30, 50
    x3 = jax.random.normal(jax.random.PRNGKey(2), (B3, C3, H3, W3), jnp.float32)
    mix_index3 = np.array([1, 0], dtype=np.int32)
    bbox3 = np.array([5, 10, 25, 40], dtype=np.int32)
    out3 = jax.block_until_ready(cutmix_forward(x3, mix_index3, bbox3))
    c1, d1, c2, d2 = (int(v) for v in bbox3)
    x3_np = np.asarray(x3)
    ref3 = x3_np.copy()
    ref3[:, :, c1:c2, d1:d2] = x3_np[mix_index3][:, :, c1:c2, d1:d2]
    assert np.allclose(np.asarray(out3), ref3), "mismatch vs reference (padded)"

    print("KERNEL_OK")
</pallas_src>

<mosaic_0001>
module attributes {stable_mosaic.version = 11 : i64} {
  func.func @_cutmix_kernel(%arg0: i32, %arg1: i32, %arg2: memref<2xi32, #tpu.memory_space<smem>>, %arg3: memref<1x4x2x128xf32, #tpu.memory_space<vmem>>, %arg4: memref<1x4x2x128xf32, #tpu.memory_space<vmem>>, %arg5: memref<1x1x2x128xi8, #tpu.memory_space<vmem>>, %arg6: memref<1x4x2x128xf32, #tpu.memory_space<vmem>>) attributes {dimension_semantics = [#tpu.dimension_semantics<parallel>, #tpu.dimension_semantics<parallel>], iteration_bounds = array<i64: 2, 1>, scalar_prefetch = 1 : i64, scratch_operands = 0 : i64, tpu.core_type = #tpu.core_type<tc>, window_params = [{transform_indices = @transform_0, window_bounds = array<i64: 1, 4, 2, 128>}, {transform_indices = @transform_1, window_bounds = array<i64: 1, 4, 2, 128>}, {transform_indices = @transform_2, window_bounds = array<i64: 1, 1, 2, 128>}, {transform_indices = @transform_3, window_bounds = array<i64: 1, 4, 2, 128>}]} {
    %c0 = arith.constant 0 : index
    %c0_0 = arith.constant 0 : index
    %c0_1 = arith.constant 0 : index
    %c0_2 = arith.constant 0 : index
    %0 = vector.load %arg5[%c0, %c0_0, %c0_1, %c0_2] : memref<1x1x2x128xi8, #tpu.memory_space<vmem>>, vector<1x1x2x128xi8>
    %c0_i8 = arith.constant 0 : i8
    %1 = vector.broadcast %c0_i8 : i8 to vector<1x1x2x128xi8>
    %2 = arith.cmpi ne, %0, %1 : vector<1x1x2x128xi8>
    %c0_3 = arith.constant 0 : index
    %c0_4 = arith.constant 0 : index
    %c0_5 = arith.constant 0 : index
    %c0_6 = arith.constant 0 : index
    %3 = vector.load %arg4[%c0_3, %c0_4, %c0_5, %c0_6] : memref<1x4x2x128xf32, #tpu.memory_space<vmem>>, vector<1x4x2x128xf32>
    %c0_7 = arith.constant 0 : index
    %c0_8 = arith.constant 0 : index
    %c0_9 = arith.constant 0 : index
    %c0_10 = arith.constant 0 : index
    %4 = vector.load %arg3[%c0_7, %c0_8, %c0_9, %c0_10] : memref<1x4x2x128xf32, #tpu.memory_space<vmem>>, vector<1x4x2x128xf32>
    %5 = vector.shape_cast %2 : vector<1x1x2x128xi1> to vector<1x1x2x128xi1>
    %6 = vector.broadcast %5 : vector<1x1x2x128xi1> to vector<1x4x2x128xi1>
    %7 = arith.select %6, %3, %4 : vector<1x4x2x128xi1>, vector<1x4x2x128xf32>
    %c0_11 = arith.constant 0 : index
    %c0_12 = arith.constant 0 : index
    %c0_13 = arith.constant 0 : index
    %c0_14 = arith.constant 0 : index
    %8 = vector.load %arg6[%c0_11, %c0_12, %c0_13, %c0_14] : memref<1x4x2x128xf32, #tpu.memory_space<vmem>>, vector<1x4x2x128xf32>
    tpu.vector_store %arg6[%c0_11, %c0_12, %c0_13, %c0_14], %7 {strides = array<i32>} : memref<1x4x2x128xf32, #tpu.memory_space<vmem>>, vector<1x4x2x128xf32>,
    return
  }
  func.func @transform_0(%arg0: i32, %arg1: i32, %arg2: memref<2xi32, #tpu.memory_space<smem>>) -> (i32, i32, i32, i32) {
    %c0_i32 = arith.constant 0 : i32
    %c0_i32_0 = arith.constant 0 : i32
    %c0_i32_1 = arith.constant 0 : i32
    return %arg0, %c0_i32, %arg1, %c0_i32_0 : i32, i32, i32, i32
  }
  func.func @transform_1(%arg0: i32, %arg1: i32, %arg2: memref<2xi32, #tpu.memory_space<smem>>) -> (i32, i32, i32, i32) {
    %c0_i32 = arith.constant 0 : i32
    %0 = arith.maxsi %arg1, %c0_i32 : i32
    %c0_i32_0 = arith.constant 0 : i32
    %1 = arith.minsi %0, %c0_i32_0 : i32
    %2 = arith.index_cast %arg0 : i32 to index
    %3 = memref.load %arg2[%2] : memref<2xi32, #tpu.memory_space<smem>>
    %c0_i32_1 = arith.constant 0 : i32
    %c0_i32_2 = arith.constant 0 : i32
    %c0_i32_3 = arith.constant 0 : i32
    return %3, %c0_i32_1, %1, %c0_i32_2 : i32, i32, i32, i32
  }
  func.func @transform_2(%arg0: i32, %arg1: i32, %arg2: memref<2xi32, #tpu.memory_space<smem>>) -> (i32, i32, i32, i32) {
    %c0_i32 = arith.constant 0 : i32
    %c0_i32_0 = arith.constant 0 : i32
    %c0_i32_1 = arith.constant 0 : i32
    %c0_i32_2 = arith.constant 0 : i32
    return %c0_i32, %arg1, %c0_i32_0, %c0_i32_1 : i32, i32, i32, i32
  }
  func.func @transform_3(%arg0: i32, %arg1: i32, %arg2: memref<2xi32, #tpu.memory_space<smem>>) -> (i32, i32, i32, i32) {
    %c0_i32 = arith.constant 0 : i32
    %c0_i32_0 = arith.constant 0 : i32
    %c0_i32_1 = arith.constant 0 : i32
    return %arg0, %c0_i32, %arg1, %c0_i32_0 : i32, i32, i32, i32
  }
}

</mosaic_0001>

<llo_original>
// kernel: tpu_custom_call.1
$region0: #{tpu_custom_call.1}
  #allocation0 [shape = 'u32[]', space=smem, size = 0x4, offset = 0x4, fixed_abs, tag = 'smem constant byte address 0x4 - core index']
  #allocation1 [shape = 'u32[144,128]{1,0:T(1,128)}', space=vmem, size = 0x12000, scoped, tag = 'internal scratch']
  #allocation2 [shape = 's32[1]{0}', space=sflag, size = 0x4, scoped, tag = 'scoped memory for tpu_custom_call.1']
  #allocation3 [shape = 'u8[512]{0}', space=smem, size = 0x200, scoped, tag = 'prefetched SMEM operand 0']
  %s0 = inlined_call_operand.hbm [shape: s32[2], index: 0, kind: input, shape index: {}]
  %s1 = inlined_call_operand.hbm [shape: f32[2,4,2,128], index: 1, kind: input, shape index: {}]
  %s2 = inlined_call_operand.hbm [shape: f32[2,4,2,128], index: 2, kind: input, shape index: {}]
  %s3 = inlined_call_operand.vmem [shape: s8[1,1,2,128], index: 3, kind: input, shape index: {}]
  %s4 = inlined_call_operand.hbm [shape: f32[2,4,2,128], index: 4, kind: output, shape index: {}]
  %s5 = sld [smem:[#allocation0]]
  $region53: #{tpu_custom_call.1} parent=0
    _
  %s7 = ssub.s32 1, %s5
  %s8 = scalar_select 0, %s7, %s5
  %10 = dma.hbm_to_smem %s0, 16, [#allocation3], [#allocation2]
  %11 = dma.done [#allocation2], 16
  %12 = sfence
  $region1: #{tpu_custom_call.1} parent=0
    #allocation4 [shape = 'u8[8192]{0}', space=vmem, size = 0x2000, scoped, tag = 'input window, operand 1']
    #allocation5 [shape = 's32[2]{0}', space=sflag, size = 0x8, scoped, tag = 'scoped memory for tpu_custom_call.1']
    #allocation6 [shape = 's32[2]{0}', space=sflag, size = 0x8, scoped, tag = 'scoped memory for tpu_custom_call.1']
    #allocation7 [shape = 'u8[8192]{0}', space=vmem, size = 0x2000, scoped, tag = 'input window, operand 2']
    #allocation8 [shape = 's32[2]{0}', space=sflag, size = 0x8, scoped, tag = 'scoped memory for tpu_custom_call.1']
    #allocation9 [shape = 'u8[8192]{0}', space=vmem, size = 0x2000, scoped, tag = 'output window, operand 0']
    %13 = vsyncpa [#allocation5], 0
    %s14 = scalar_lea.sflag [#allocation5], 1
    %15 = vsyncpa %s14, 0
    %16 = vsyncpa [#allocation8], 0
    %s17 = scalar_lea.sflag [#allocation8], 1
    %18 = vsyncpa %s17, 0
    %19 = vsyncpa [#allocation6], 0
    %s20 = scalar_lea.sflag [#allocation6], 1
    %21 = vsyncpa %s20, 0
    loop: start=0, step=1, limit=4
    $region2: #{tpu_custom_call.1} parent=1 // loop_pre_header
      _
    $region3: #{tpu_custom_call.1} parent=1 // loop_header
      %s23 = sphi 0, %s27
      %p24 = scmp.ge.s32.totalorder %s23, 4
      %s30 = sphi 0, %s42
      %s31 = sphi 0, %s38
      %s32 = sphi 0, %s30
      %s33 = sphi 0, %s31
      %s34 = sphi 0, %s32
      %s35 = sphi 0, %s33
      %s47 = sphi 0, %s49
      %s50 = sphi 0, %s47
      %s51 = sphi 0, %s50
      %s67 = sphi 0, %s51
      %s85 = sphi 0, %s87
      %s88 = sphi 0, %s85
      %s89 = sphi 0, %s88
      %s105 = sphi 0, %s89
      %s111 = sphi 0, %s113
      %s114 = sphi 0, %s111
      %s115 = sphi 0, %s114
      %s131 = sphi 0, %s115
      %s139 = sphi 0, %s141
      %s142 = sphi 0, %s139
      %s143 = sphi 0, %s142
      %s159 = sphi 0, %s143
    $region4: #{tpu_custom_call.1} parent=1 // loop_header_branch
      %26 = sbr.rel (%p24) target = $region8
    $region5: #{tpu_custom_call.1} parent=1 // loop_body
      %s28 = ssub.s32 %s23, 1
      %s29 = ssub.s32 %s23, 2
      %s36 = sadd.s32 1, %s31
      %p37 = scmp.ge.s32.totalorder %s36, 1
      %s38 = scalar_select %p37, 0, %s36
      %s39 = sadd.s32 1, %s30
      %s40 = scalar_select %p37, %s39, %s30
      %p41 = scmp.ge.s32.totalorder %s40, 2
      %s42 = scalar_select %p41, 0, %s40
      %s43 = ssub.s32 %s30, %s42
      %s44 = ssub.s32 %s31, %s38
      %s45 = sor.u32 %s43, %s44
      %p46 = scmp.eq.s32.totalorder %s45, 0
      %s48 = sadd.s32 %s47, 1
      %s49 = scalar_select %p46, %s47, %s48
      %p52 = pneg %p46
      %p53 = scmp.eq.s32.totalorder %s23, 1
      %p54 = por %p52, %p53
      %p55 = scmp.ne.s32.totalorder %s47, %s50
      %p56 = scmp.eq.s32.totalorder %s23, 0
      %p57 = por %p55, %p56
      %p58 = scmp.ne.s32.totalorder %s47, %s50
      %p59 = scmp.eq.s32.totalorder %s28, 1
      %p60 = por %p58, %p59
      %p61 = scmp.ne.s32.totalorder %s50, %s51
      %p62 = scmp.eq.s32.totalorder %s28, 0
      %p63 = por %p61, %p62
      %p64 = scmp.ne.s32.totalorder %s50, %s51
      %p65 = scmp.eq.s32.totalorder %s29, 1
      %p66 = por %p64, %p65
      %p68 = scmp.ne.s32.totalorder %s51, %s67
      %p69 = scmp.eq.s32.totalorder %s29, 0
      %p70 = por %p68, %p69
      %p71 = scmp.gt.s32.totalorder %s31, 0
      %s72 = scalar_select %p71, %s31, 0
      %p73 = scmp.lt.s32.totalorder %s72, 0
      %s74 = scalar_select %p73, %s72, 0
      %s75 = sld [smem:[#allocation3 + %s30]]
      %p76 = scmp.gt.s32.totalorder %s38, 0
      %s77 = scalar_select %p76, %s38, 0
      %p78 = scmp.lt.s32.totalorder %s77, 0
      %s79 = scalar_select %p78, %s77, 0
      %s80 = sld [smem:[#allocation3 + %s42]]
      %s81 = ssub.s32 %s75, %s80
      %s82 = ssub.s32 %s74, %s79
      %s83 = sor.u32 %s81, %s82
      %p84 = scmp.eq.s32.totalorder %s83, 0
      %s86 = sadd.s32 %s85, 1
      %s87 = scalar_select %p84, %s85, %s86
      %p90 = pneg %p84
      %p91 = scmp.eq.s32.totalorder %s23, 1
      %p92 = por %p90, %p91
      %p93 = scmp.ne.s32.totalorder %s85, %s88
      %p94 = scmp.eq.s32.totalorder %s23, 0
      %p95 = por %p93, %p94
      %p96 = scmp.ne.s32.totalorder %s85, %s88
      %p97 = scmp.eq.s32.totalorder %s28, 1
      %p98 = por %p96, %p97
      %p99 = scmp.ne.s32.totalorder %s88, %s89
      %p100 = scmp.eq.s32.totalorder %s28, 0
      %p101 = por %p99, %p100
      %p102 = scmp.ne.s32.totalorder %s88, %s89
      %p103 = scmp.eq.s32.totalorder %s29, 1
      %p104 = por %p102, %p103
      %p106 = scmp.ne.s32.totalorder %s89, %s105
      %p107 = scmp.eq.s32.totalorder %s29, 0
      %p108 = por %p106, %p107
      %s109 = ssub.s32 %s31, %s38
      %p110 = scmp.eq.s32.totalorder %s109, 0
      %s112 = sadd.s32 %s111, 1
      %s113 = scalar_select %p110, %s111, %s112
      %p116 = pneg %p110
      %p117 = scmp.eq.s32.totalorder %s23, 1
      %p118 = por %p116, %p117
      %p119 = scmp.ne.s32.totalorder %s111, %s114
      %p120 = scmp.eq.s32.totalorder %s23, 0
      %p121 = por %p119, %p120
      %p122 = scmp.ne.s32.totalorder %s111, %s114
      %p123 = scmp.eq.s32.totalorder %s28, 1
      %p124 = por %p122, %p123
      %p125 = scmp.ne.s32.totalorder %s114, %s115
      %p126 = scmp.eq.s32.totalorder %s28, 0
      %p127 = por %p125, %p126
      %p128 = scmp.ne.s32.totalorder %s114, %s115
      %p129 = scmp.eq.s32.totalorder %s29, 1
      %p130 = por %p128, %p129
      %p132 = scmp.ne.s32.totalorder %s115, %s131
      %p133 = scmp.eq.s32.totalorder %s29, 0
      %p134 = por %p132, %p133
      %s135 = ssub.s32 %s30, %s42
      %s136 = ssub.s32 %s31, %s38
      %s137 = sor.u32 %s135, %s136
      %p138 = scmp.eq.s32.totalorder %s137, 0
      %s140 = sadd.s32 %s139, 1
      %s141 = scalar_select %p138, %s139, %s140
      %p144 = pneg %p138
      %p145 = scmp.eq.s32.totalorder %s23, 1
      %p146 = por %p144, %p145
      %p147 = scmp.ne.s32.totalorder %s139, %s142
      %p148 = scmp.eq.s32.totalorder %s23, 0
      %p149 = por %p147, %p148
      %p150 = scmp.ne.s32.totalorder %s139, %s142
      %p151 = scmp.eq.s32.totalorder %s28, 1
      %p152 = por %p150, %p151
      %p153 = scmp.ne.s32.totalorder %s142, %s143
      %p154 = scmp.eq.s32.totalorder %s28, 0
      %p155 = por %p153, %p154
      %p156 = scmp.ne.s32.totalorder %s142, %s143
      %p157 = scmp.eq.s32.totalorder %s29, 1
      %p158 = por %p156, %p157
      %p160 = scmp.ne.s32.totalorder %s143, %s159
      %p161 = scmp.eq.s32.totalorder %s29, 0
      %p162 = por %p160, %p161
      %p163 = scmp.le.s32.totalorder 1, %s23
      %p164 = scmp.lt.s32.totalorder %s23, 3
      %p165 = pnand %p163, %p164
      %p166 = pneg %p165
      // Predicated region
      $region9: #{tpu_custom_call.1} parent=5 // pred_check
        _
      $region10: #{tpu_custom_call.1} parent=5 // pred_check_branch
        %168 = sbr.rel (%p165) target = $region12
      $region11: #{tpu_custom_call.1} parent=5 // pred_region
        %s169 = ssub.s32 %s23, 1
        // Predicated region
        $region13: #{tpu_custom_call.1} parent=11 // pred_check
          %p170 = pneg %p127
        $region14: #{tpu_custom_call.1} parent=11 // pred_check_branch
          %172 = sbr.rel (%p170) target = $region16
        $region15: #{tpu_custom_call.1} parent=11 // pred_region
          %p173 = scmp.lt.s32.totalorder %s33, 0
          %s174 = scalar_select %p173, %s33, 0
          %s175 = scalar_lea.vmem %s3, %s174
        $region16: #{tpu_custom_call.1} parent=11 // pred_fallthru
          _
      $region12: #{tpu_custom_call.1} parent=5 // pred_fallthru
        _
      %p176 = scmp.lt.s32.totalorder %s23, 2
      // Predicated region
      $region17: #{tpu_custom_call.1} parent=5 // pred_check
        %p177 = pneg %p176
      $region18: #{tpu_custom_call.1} parent=5 // pred_check_branch
        %179 = sbr.rel (%p177) target = $region20
      $region19: #{tpu_custom_call.1} parent=5 // pred_region
        // Predicated region
        $region21: #{tpu_custom_call.1} parent=19 // pred_check
          %p180 = pneg %p57
        $region22: #{tpu_custom_call.1} parent=19 // pred_check_branch
          %182 = sbr.rel (%p180) target = $region24
        $region23: #{tpu_custom_call.1} parent=19 // pred_region
          %s183 = sand.u32 %s47, 1
          %s184 = scalar_lea.sflag [#allocation5], %s183
          %s185 = sand.u32 %s47, 1
          %s186 = smul.addr %s185, 8
          %s187 = scalar_lea.vmem [#allocation4], %s186
          %s189 = ssub.s32 128, 128
          %190 = vsyncadd %s184, %s189
          %s191 = smul.addr %s30, 4
          %s192 = sadd.s32 %s31, %s191
          %s193 = smul.addr %s192, 32
          %s194 = scalar_lea.hbm %s1, %s193
          %s195 = sshll.u32 %s187, 4
          %s196 = int_to_ptr.vmem [resolvable:$true] %s195
          %201 = dma.hbm_to_vmem [thread:$0]  %s194, 128, %s196, %s184, 32, 32, 2
        $region24: #{tpu_custom_call.1} parent=19 // pred_fallthru
          _
        // Predicated region
        $region25: #{tpu_custom_call.1} parent=19 // pred_check
          %p202 = pneg %p95
        $region26: #{tpu_custom_call.1} parent=19 // pred_check_branch
          %204 = sbr.rel (%p202) target = $region28
        $region27: #{tpu_custom_call.1} parent=19 // pred_region
          %s205 = sand.u32 %s85, 1
          %s206 = scalar_lea.sflag [#allocation8], %s205
          %s207 = sand.u32 %s85, 1
          %s208 = smul.addr %s207, 8
          %s209 = scalar_lea.vmem [#allocation7], %s208
          %p210 = scmp.gt.s32.totalorder %s31, 0
          %s211 = scalar_select %p210, %s31, 0
          %p212 = scmp.lt.s32.totalorder %s211, 0
          %s213 = scalar_select %p212, %s211, 0
          %s214 = sld [smem:[#allocation3 + %s30]]
          %s216 = ssub.s32 128, 128
          %217 = vsyncadd %s206, %s216
          %s218 = smul.addr %s214, 4
          %s219 = sadd.s32 %s213, %s218
          %s220 = smul.addr %s219, 32
          %s221 = scalar_lea.hbm %s2, %s220
          %s222 = sshll.u32 %s209, 4
          %s223 = int_to_ptr.vmem [resolvable:$true] %s222
          %228 = dma.hbm_to_vmem [thread:$0]  %s221, 128, %s223, %s206, 32, 32, 2
        $region28: #{tpu_custom_call.1} parent=19 // pred_fallthru
          _
      $region20: #{tpu_custom_call.1} parent=5 // pred_fallthru
        _
      %p229 = scmp.le.s32.totalorder 1, %s23
      %p230 = scmp.lt.s32.totalorder %s23, 3
      %p231 = pnand %p229, %p230
      %p232 = pneg %p231
      // Predicated region
      $region29: #{tpu_custom_call.1} parent=5 // pred_check
        _
      $region30: #{tpu_custom_call.1} parent=5 // pred_check_branch
        %234 = sbr.rel (%p231) target = $region32
      $region31: #{tpu_custom_call.1} parent=5 // pred_region
        %s235 = ssub.s32 %s23, 1
        %s236 = sand.u32 %s50, 1
        %s237 = scalar_lea.sflag [#allocation5], %s236
        %s238 = sand.u32 %s50, 1
        %s239 = smul.addr %s238, 8
        %s240 = scalar_lea.vmem [#allocation4], %s239
        // Predicated region
        $region33: #{tpu_custom_call.1} parent=31 // pred_check
          %p241 = pneg %p63
        $region34: #{tpu_custom_call.1} parent=31 // pred_check_branch
          %243 = sbr.rel (%p241) target = $region36
        $region35: #{tpu_custom_call.1} parent=31 // pred_region
          %244 = dma.done %s237, 128
        $region36: #{tpu_custom_call.1} parent=31 // pred_fallthru
          _
        %s245 = sand.u32 %s88, 1
        %s246 = scalar_lea.sflag [#allocation8], %s245
        %s247 = sand.u32 %s88, 1
        %s248 = smul.addr %s247, 8
        %s249 = scalar_lea.vmem [#allocation7], %s248
        // Predicated region
        $region37: #{tpu_custom_call.1} parent=31 // pred_check
          %p250 = pneg %p101
        $region38: #{tpu_custom_call.1} parent=31 // pred_check_branch
          %252 = sbr.rel (%p250) target = $region40
        $region39: #{tpu_custom_call.1} parent=31 // pred_region
          %253 = dma.done %s246, 128
        $region40: #{tpu_custom_call.1} parent=31 // pred_fallthru
          _
        %s254 = sand.u32 %s50, 1
        %s255 = scalar_lea.sflag [#allocation5], %s254
        %s256 = sand.u32 %s50, 1
        %s257 = smul.addr %s256, 8
        %s258 = scalar_lea.vmem [#allocation4], %s257
        %p259 = pneg %p63
        %p260 = pneg %p60
        %s261 = sand.u32 %s88, 1
        %s262 = scalar_lea.sflag [#allocation8], %s261
        %s263 = sand.u32 %s88, 1
        %s264 = smul.addr %s263, 8
        %s265 = scalar_lea.vmem [#allocation7], %s264
        %p266 = pneg %p101
        %p267 = pneg %p98
        %p268 = scmp.lt.s32.totalorder %s33, 0
        %s269 = scalar_select %p268, %s33, 0
        %s270 = scalar_lea.vmem %s3, %s269
        %p271 = pneg %p127
        %p272 = pneg %p124
        %p273 = pneg %p155
        %p274 = pneg %p152
        %s275 = sand.u32 %s142, 1
        %s276 = scalar_lea.sflag [#allocation6], %s275
        %s277 = sand.u32 %s142, 1
        %s278 = smul.addr %s277, 8
        %s279 = scalar_lea.vmem [#allocation9], %s278
        %p280 = scmp.gt.s32.totalorder %s33, 0
        %s281 = scalar_select %p280, %s33, 0
        %p282 = scmp.lt.s32.totalorder %s281, 0
        %s283 = scalar_select %p282, %s281, 0
        %s284 = sld [smem:[#allocation3 + %s32]]
        %p285 = scmp.lt.s32.totalorder %s33, 0
        %s286 = scalar_select %p285, %s33, 0
        %s287 = scalar_lea.vmem %s3, %s286
        %v290 = vld [vmem:[%s287] sm:$0x1]
        %vm291 = vnez %v290
        %v292 = vld [vmem:[%s249] sm:$0x3]
        %v293 = vld [vmem:[%s249 + $0x2] sm:$0x3]
        %v294 = vld [vmem:[%s249 + $0x4] sm:$0x3]
        %v295 = vld [vmem:[%s249 + $0x6] sm:$0x3]
        %v296 = vld [vmem:[%s240] sm:$0x3]
        %v297 = vld [vmem:[%s240 + $0x2] sm:$0x3]
        %v298 = vld [vmem:[%s240 + $0x4] sm:$0x3]
        %v299 = vld [vmem:[%s240 + $0x6] sm:$0x3]
        %v300 = vsel %vm291, 16843009, 0
        %v301 = vunpack.c.0.s8 %v300
        %vm302 = vcmp.ne.s32.totalorder %v301, 0
        %v303 = vsel %vm302, 1, 0
        %vm304 = vcmp.eq.s32.totalorder %v303, 1
        %v305 = vsel %vm304, %v292, %v296
        %v306 = vsel %vm304, %v293, %v297
        %v307 = vsel %vm304, %v294, %v298
        %v308 = vsel %vm304, %v295, %v299
        %309 = vst [vmem:[%s279] sm:$0x3] %v305
        %310 = vst [vmem:[%s279 + $0x2] sm:$0x3] %v306
        %311 = vst [vmem:[%s279 + $0x4] sm:$0x3] %v307
        %312 = vst [vmem:[%s279 + $0x6] sm:$0x3] %v308
        %s313 = sand.u32 %s142, 1
        %s314 = scalar_lea.sflag [#allocation6], %s313
        %s315 = sand.u32 %s142, 1
        %s316 = smul.addr %s315, 8
        %s317 = scalar_lea.vmem [#allocation9], %s316
        // Predicated region
        $region41: #{tpu_custom_call.1} parent=31 // pred_check
          %p318 = pneg %p152
        $region42: #{tpu_custom_call.1} parent=31 // pred_check_branch
          %320 = sbr.rel (%p318) target = $region44
        $region43: #{tpu_custom_call.1} parent=31 // pred_region
          %s322 = ssub.s32 128, 128
          %323 = vsyncadd %s314, %s322
          %s324 = smul.addr %s32, 4
          %s325 = sadd.s32 %s33, %s324
          %s326 = smul.addr %s325, 32
          %s327 = scalar_lea.hbm %s4, %s326
          %s328 = sshll.u32 %s317, 4
          %s329 = int_to_ptr.vmem [resolvable:$true] %s328
          %334 = dma.vmem_to_hbm [thread:$0]  %s329, 128, %s327, %s314, 32, 32, 2
        $region44: #{tpu_custom_call.1} parent=31 // pred_fallthru
          _
      $region32: #{tpu_custom_call.1} parent=5 // pred_fallthru
        _
      %p335 = scmp.le.s32.totalorder 2, %s23
      // Predicated region
      $region45: #{tpu_custom_call.1} parent=5 // pred_check
        %p336 = pneg %p335
      $region46: #{tpu_custom_call.1} parent=5 // pred_check_branch
        %338 = sbr.rel (%p336) target = $region48
      $region47: #{tpu_custom_call.1} parent=5 // pred_region
        %s339 = ssub.s32 %s23, 2
        // Predicated region
        $region49: #{tpu_custom_call.1} parent=47 // pred_check
          %p340 = pneg %p158
        $region50: #{tpu_custom_call.1} parent=47 // pred_check_branch
          %342 = sbr.rel (%p340) target = $region52
        $region51: #{tpu_custom_call.1} parent=47 // pred_region
          %s343 = sand.u32 %s143, 1
          %s344 = scalar_lea.sflag [#allocation6], %s343
          %s345 = sand.u32 %s143, 1
          %s346 = smul.addr %s345, 8
          %s347 = scalar_lea.vmem [#allocation9], %s346
          %348 = dma.done %s344, 128
        $region52: #{tpu_custom_call.1} parent=47 // pred_fallthru
          _
      $region48: #{tpu_custom_call.1} parent=5 // pred_fallthru
        _
    $region6: #{tpu_custom_call.1} parent=1 // loop_footer
      %s27 = sadd.s32 1, %s23
    $region7: #{tpu_custom_call.1} parent=1 // loop_footer_branch
      %22 = sbr.rel target = $region3
    $region8: #{tpu_custom_call.1} parent=1 // loop_exit
      _
    %349 = vsyncpa [#allocation5], 1
    %s350 = scalar_lea.sflag [#allocation5], 1
    %351 = vsyncpa %s350, 1
    %352 = vsyncpa [#allocation8], 1
    %s353 = scalar_lea.sflag [#allocation8], 1
    %354 = vsyncpa %s353, 1
    %355 = vsyncpa [#allocation6], 1
    %s356 = scalar_lea.sflag [#allocation6], 1
    %357 = vsyncpa %s356, 1

</llo_original>
